<compile_context>
chip_gen: v6e
topology: v6e:2x2x1
jax: 0.10.0
libtpu: 0.0.40
codegen_flags: <defaults>
</compile_context>

<pallas_src>
import functools
import math

import jax
import jax.numpy as jnp
import numpy as np
from jax.experimental import pallas as pl
from jax.experimental.pallas import tpu as pltpu

_BN_EPS = 1e-5
_F32 = jnp.float32
_BF16 = jnp.bfloat16


def _round_up(x, m):
    return -(-x // m) * m


# ----------------------------- roll-sign probe ------------------------------

def _vmem_spec():
    return pl.BlockSpec(memory_space=pltpu.MemorySpace.VMEM)


def _roll_probe_kernel(x_ref, o_ref):
    o_ref[...] = pltpu.roll(x_ref[...], 1, 1)


def _detect_roll_sign():
    """Returns s such that pltpu.roll(x, s*off % n, 1)[:, m] == x[:, m+off]."""
    base = np.arange(128, dtype=np.float32)          # exact small integers
    x = jnp.tile(jnp.asarray(base)[None, :], (8, 1))
    y = np.asarray(pl.pallas_call(
        _roll_probe_kernel,
        out_shape=jax.ShapeDtypeStruct((8, 128), _F32),
        in_specs=[_vmem_spec()],
        out_specs=_vmem_spec(),
    )(x))[0]
    if np.array_equal(y, np.roll(base, -1)):         # roll(x,+1)[m] == x[m+1]
        return 1
    if np.array_equal(y, np.roll(base, 1)):          # jnp.roll convention
        return -1
    raise RuntimeError("unexpected pltpu.roll semantics")


# ------------------------------- main kernel --------------------------------

def _branch_kernel(mask1_ref, mask2_ref, mask3_ref, d1_ref, d2_ref,
                   p1_ref, p2_ref, pool_ref,
                   x_ref, stem_ref, wA_ref, w2a_ref, wB_ref, w4a_ref, wC_ref,
                   scale_ref, bias_ref, fcw_ref, fcb_ref,
                   o_ref, *, sign, wp1, wp2, wp3):
    """One full ResNet-14 branch, VMEM/vreg-resident.

    Activation layout: (C, Mp) bf16 with Mp = round_up(N*(H+2)*(W+2), 128),
    column m = (n*(H+2)+h)*(W+2)+w.  The 1-pixel halo ring and the lane tail
    stay zero, so every conv tap is a plain lane rotation reading zeros at
    the image borders.
    """
    mask1 = mask1_ref[...]                       # (1, Mp1) f32 interior mask
    mask2 = mask2_ref[...]                       # (1, Mp2)
    mask3 = mask3_ref[...]                       # (1, Mp3)

    def conv(x, w, row_w):
        # x: (Cin, Mp) bf16 (zero halo); w: (Cout, 9*Cin) bf16, tap-major K.
        mp = x.shape[1]
        parts = []
        for kh in (-1, 0, 1):
            for kw in (-1, 0, 1):
                off = kh * row_w + kw
                parts.append(x if off == 0
                             else pltpu.roll(x, (sign * off) % mp, 1))
        xs = jnp.concatenate(parts, axis=0)                  # (9*Cin, Mp)
        return jnp.dot(w, xs, preferred_element_type=_F32)   # (Cout, Mp) f32

    def scale_bias(off, cout):
        return (scale_ref[pl.ds(off, cout), :],
                bias_ref[pl.ds(off, cout), :])

    def bn_relu(acc, off, cout, mask):
        s, b = scale_bias(off, cout)
        # f32 epilogue; single mask multiply re-zeros halo + lane tail.
        return (jnp.maximum(acc * s + b, 0.0) * mask).astype(_BF16)

    def block(h, w1, w2, off1, off2, cout, row_in, row_out, mask_out,
              dmat=None, pmat=None):
        a1 = conv(h, w1, row_in)                             # (cout, Mp_in)
        if dmat is not None:                                 # stride-2 (::2)
            a1 = jnp.dot(a1.astype(_BF16), dmat, preferred_element_type=_F32)
        y = bn_relu(a1, off1, cout, mask_out)                # (cout, Mp_out)
        a2 = conv(y, w2, row_out)
        if dmat is not None:
            # option-'A' shortcut: ::2 spatial subsample + channel zero-pad.
            sc = jnp.dot(h, dmat, preferred_element_type=_F32)
            sc = jnp.dot(pmat, sc.astype(_BF16), preferred_element_type=_F32)
        else:
            sc = h.astype(_F32)
        s, b = scale_bias(off2, cout)
        return (jnp.maximum(a2 * s + b + sc, 0.0) * mask_out).astype(_BF16)

    # Stem conv + BN + ReLU.
    h = bn_relu(conv(x_ref[...], stem_ref[...], wp1), 0, 16, mask1)
    # layer1 (16ch, 16x16), layer2 (32ch, 8x8), layer3 (64ch, 4x4).
    h = block(h, wA_ref[0], wA_ref[1], 16, 32, 16, wp1, wp1, mask1)
    h = block(h, wA_ref[2], wA_ref[3], 48, 64, 16, wp1, wp1, mask1)
    h = block(h, w2a_ref[...], wB_ref[0], 80, 112, 32, wp1, wp2, mask2,
              d1_ref[...], p1_ref[...])
    h = block(h, wB_ref[1], wB_ref[2], 144, 176, 32, wp2, wp2, mask2)
    h = block(h, w4a_ref[...], wC_ref[0], 208, 272, 64, wp2, wp3, mask3,
              d2_ref[...], p2_ref[...])
    h = block(h, wC_ref[1], wC_ref[2], 336, 400, 64, wp3, wp3, mask3)

    # Global average pool (matmul with a 1/(H*W) selection matrix) + branch fc.
    pooled = jnp.dot(h, pool_ref[...], preferred_element_type=_F32)   # (64, N)
    feat = jnp.dot(fcw_ref[...], pooled.astype(_BF16),
                   preferred_element_type=_F32) + fcb_ref[...]        # (32, N)
    # TODO(synk): nn.Dropout(p=0.5) is treated as eval-mode identity (no RNG).
    o_ref[...] = feat


# ----------------------------- spec helpers ---------------------------------

def _shared_spec(shape):
    zeros = (0,) * len(shape)
    return pl.BlockSpec(tuple(shape), lambda b: zeros)


def _branch_spec(shape):
    block = (None,) + tuple(shape[1:])
    zeros = (0,) * (len(shape) - 1)
    return pl.BlockSpec(block, lambda b: (b,) + zeros)


# ------------------------ precomputed constant matrices ---------------------

def _interior_mask(n, hi, wi, mp):
    hp, wp = hi + 2, wi + 2
    m = np.zeros((1, mp), np.float32)
    for b in range(n):
        for hh in range(hi):
            for ww in range(wi):
                m[0, b * hp * wp + (hh + 1) * wp + (ww + 1)] = 1.0
    return jnp.asarray(m)


def _downsample(n, hi, wi, mp_in, mp_out):
    # padded stage-in layout (hi x wi interior) -> padded stage-out (hi/2 x wi/2)
    hp_i, wp_i = hi + 2, wi + 2
    ho, wo = hi // 2, wi // 2
    hp_o, wp_o = ho + 2, wo + 2
    d = np.zeros((mp_in, mp_out), np.float32)
    for b in range(n):
        for oh in range(ho):
            for ow in range(wo):
                src = b * hp_i * wp_i + (2 * oh + 1) * wp_i + (2 * ow + 1)
                dst = b * hp_o * wp_o + (oh + 1) * wp_o + (ow + 1)
                d[src, dst] = 1.0
    return jnp.asarray(d, _BF16)


def _pool_mat(n, hi, wi, mp):
    hp, wp = hi + 2, wi + 2
    p = np.zeros((mp, n), np.float32)
    for b in range(n):
        for hh in range(hi):
            for ww in range(wi):
                p[b * hp * wp + (hh + 1) * wp + (ww + 1), b] = 1.0 / (hi * wi)
    return jnp.asarray(p, _BF16)


def _chan_pad(cin, cout):
    pad = cout // 4
    m = np.zeros((cout, cin), np.float32)
    m[pad + np.arange(cin), np.arange(cin)] = 1.0
    return jnp.asarray(m, _BF16)


# ------------------------------ param init ----------------------------------

def _bn_fold(planes):
    # eval-mode BN with gamma=1, beta=0, running_mean=0, running_var=1.
    scale = jnp.full((planes,), 1.0 / math.sqrt(1.0 + _BN_EPS), _F32)
    return scale, jnp.zeros((planes,), _F32)


def _conv_w(key, cin, cout):
    std = math.sqrt(2.0 / (cin * 9))                     # kaiming_normal fan_in
    w = std * jax.random.normal(key, (cout, cin, 3, 3), _F32)
    return w.astype(_BF16).astype(_F32)                  # bf16-rounded (MXU dtype)


def _linear(key, fin, fout, round_bf16=True):
    kw, kb = jax.random.split(key)
    w = math.sqrt(2.0 / fin) * jax.random.normal(kw, (fout, fin), _F32)
    if round_bf16:
        w = w.astype(_BF16).astype(_F32)
    bound = 1.0 / math.sqrt(fin)
    b = jax.random.uniform(kb, (fout,), _F32, -bound, bound)
    return w, b


_BLOCK_CFG = [(16, 16, 1), (16, 16, 1),
              (16, 32, 2), (32, 32, 1),
              (32, 64, 2), (64, 64, 1)]


def _init_branch(key, inc):
    ks = jax.random.split(key, len(_BLOCK_CFG) + 2)
    stem_s, stem_b = _bn_fold(16)
    fc_w, fc_b = _linear(ks[1], 64, 32)
    blocks = []
    for i, (cin, planes, stride) in enumerate(_BLOCK_CFG):
        k1, k2 = jax.random.split(ks[2 + i])
        s1, b1 = _bn_fold(planes)
        s2, b2 = _bn_fold(planes)
        blocks.append(dict(stride=stride,
                           w1=_conv_w(k1, cin, planes), s1=s1, b1=b1,
                           w2=_conv_w(k2, planes, planes), s2=s2, b2=b2))
    return dict(stem_w=_conv_w(ks[0], inc, 16), stem_s=stem_s, stem_b=stem_b,
                blocks=blocks, fc_w=fc_w, fc_b=fc_b)


def init_resnet14(key, inc, outc):
    kl, kr, kf = jax.random.split(key, 3)
    fc_w, fc_b = _linear(kf, 64, outc, round_bf16=False)  # head fc stays f32
    return dict(left=_init_branch(kl, inc), right=_init_branch(kr, inc),
                fc_w=fc_w, fc_b=fc_b)


# ----------------------------- param packing --------------------------------

def _pack_conv(w_oihw, cin_pad=None):
    """(Cout, Cin, 3, 3) -> (Cout, 9*Cin) bf16, tap-major K (kh*3+kw, then c)."""
    cout, cin = w_oihw.shape[:2]
    t = jnp.transpose(w_oihw, (2, 3, 0, 1)).reshape(9, cout, cin)
    if cin_pad is not None and cin_pad > cin:
        t = jnp.pad(t, ((0, 0), (0, 0), (0, cin_pad - cin)))
    t = jnp.transpose(t, (1, 0, 2)).reshape(cout, -1)
    return t.astype(_BF16)


def pack_params(params, n, h, w):
    assert h % 4 == 0 and w % 4 == 0
    inc = params["left"]["stem_w"].shape[1]
    cpad = _round_up(max(inc, 1), 16)

    wp1, wp2, wp3 = w + 2, w // 2 + 2, w // 4 + 2
    hp1, hp2, hp3 = h + 2, h // 2 + 2, h // 4 + 2
    m1 = _round_up(n * hp1 * wp1, 128)
    m2 = _round_up(n * hp2 * wp2, 128)
    m3 = _round_up(n * hp3 * wp3, 128)

    shared = [
        _interior_mask(n, h, w, m1),
        _interior_mask(n, h // 2, w // 2, m2),
        _interior_mask(n, h // 4, w // 4, m3),
        _downsample(n, h, w, m1, m2),
        _downsample(n, h // 2, w // 2, m2, m3),
        _chan_pad(16, 32),
        _chan_pad(32, 64),
        _pool_mat(n, h // 4, w // 4, m3),
    ]

    def branch_list(bp):
        blocks = bp["blocks"]
        stem = _pack_conv(bp["stem_w"], cpad)                       # (16, 9*cpad)
        wA = jnp.stack([_pack_conv(blocks[i][k])
                        for i in (0, 1) for k in ("w1", "w2")])     # (4,16,144)
        w2a = _pack_conv(blocks[2]["w1"])                           # (32,144)
        wB = jnp.stack([_pack_conv(blocks[2]["w2"]),
                        _pack_conv(blocks[3]["w1"]),
                        _pack_conv(blocks[3]["w2"])])               # (3,32,288)
        w4a = _pack_conv(blocks[4]["w1"])                           # (64,288)
        wC = jnp.stack([_pack_conv(blocks[4]["w2"]),
                        _pack_conv(blocks[5]["w1"]),
                        _pack_conv(blocks[5]["w2"])])               # (3,64,576)
        scs = [bp["stem_s"]] + [blk[k] for blk in blocks for k in ("s1", "s2")]
        bss = [bp["stem_b"]] + [blk[k] for blk in blocks for k in ("b1", "b2")]
        scale = jnp.concatenate(scs).reshape(-1, 1).astype(_F32)    # (464,1)
        bias = jnp.concatenate(bss).reshape(-1, 1).astype(_F32)
        return [stem, wA, w2a, wB, w4a, wC, scale, bias,
                bp["fc_w"].astype(_BF16), bp["fc_b"].reshape(-1, 1).astype(_F32)]

    branch = [jnp.stack([a, b], axis=0)
              for a, b in zip(branch_list(params["left"]),
                              branch_list(params["right"]))]

    dims = dict(n=n, cpad=cpad, m1=m1, wp1=wp1, wp2=wp2, wp3=wp3)
    return {"shared": shared, "branch": branch, "dims": dims,
            "head_w": params["fc_w"], "head_b": params["fc_b"]}


# ------------------------------ forward pass --------------------------------

def make_forward(packed, roll_sign):
    dims = packed["dims"]
    shared = list(packed["shared"])
    branch_w = list(packed["branch"])
    head_w, head_b = packed["head_w"], packed["head_b"]
    n_feat = branch_w[8].shape[1]                      # 32 branch features
    kernel = functools.partial(_branch_kernel, sign=roll_sign,
                               wp1=dims["wp1"], wp2=dims["wp2"],
                               wp3=dims["wp3"])

    @jax.jit
    def forward(left_nchw, right_nchw):
        n = left_nchw.shape[0]
        assert n == dims["n"], "batch size must match pack_params"

        def to_cols(x):                     # NCHW -> halo-padded (Cpad, Mp1) bf16
            nb, c, hh, ww = x.shape
            y = jnp.pad(x, ((0, 0), (0, dims["cpad"] - c), (1, 1), (1, 1)))
            y = jnp.transpose(y, (1, 0, 2, 3)).reshape(dims["cpad"],
                                                       nb * (hh + 2) * (ww + 2))
            y = jnp.pad(y, ((0, 0), (0, dims["m1"] - y.shape[1])))
            return y.astype(_BF16)

        xs = jnp.stack([to_cols(left_nchw), to_cols(right_nchw)], axis=0)
        args = shared + [xs] + branch_w
        in_specs = ([_shared_spec(a.shape) for a in shared]
                    + [_branch_spec(a.shape) for a in [xs] + branch_w])
        feats = pl.pallas_call(
            kernel,
            grid=(2,),
            out_shape=jax.ShapeDtypeStruct((2, n_feat, n), _F32),
            in_specs=in_specs,
            out_specs=pl.BlockSpec((None, n_feat, n), lambda b: (b, 0, 0)),
            compiler_params=pltpu.CompilerParams(
                dimension_semantics=("parallel",)),
        )(*args)
        # Head fc on concatenated branch features, f32 in XLA (trivial matmul).
        cat = jnp.concatenate([feats[0].T, feats[1].T], axis=1)       # (N, 64)
        return cat @ head_w.T + head_b                                # (N, outc)

    return forward


# --------------------------- pure-JAX reference -----------------------------

def _ref_conv_bn(x, w, scale, bias, stride, relu=True):
    y = jax.lax.conv_general_dilated(
        x, w, (stride, stride), ((1, 1), (1, 1)),
        dimension_numbers=("NCHW", "OIHW", "NCHW"),
        precision=jax.lax.Precision.HIGHEST)
    y = y * scale[None, :, None, None] + bias[None, :, None, None]
    return jnp.maximum(y, 0.0) if relu else y


def _ref_block(x, blk):
    planes = blk["w1"].shape[0]
    out = _ref_conv_bn(x, blk["w1"], blk["s1"], blk["b1"], blk["stride"])
    out = _ref_conv_bn(out, blk["w2"], blk["s2"], blk["b2"], 1, relu=False)
    if blk["stride"] != 1 or x.shape[1] != planes:
        p = planes // 4
        sc = jnp.pad(x[:, :, ::2, ::2], ((0, 0), (p, p), (0, 0), (0, 0)))
    else:
        sc = x
    return jnp.maximum(out + sc, 0.0)


def _ref_branch(x, bp):
    out = _ref_conv_bn(x, bp["stem_w"], bp["stem_s"], bp["stem_b"], 1)
    for blk in bp["blocks"]:
        out = _ref_block(out, blk)
    pooled = jnp.mean(out, axis=(2, 3))
    return pooled @ bp["fc_w"].T + bp["fc_b"]


def _ref_forward(left, right, params):
    cat = jnp.concatenate([_ref_branch(left, params["left"]),
                           _ref_branch(right, params["right"])], axis=1)
    return cat @ params["fc_w"].T + params["fc_b"]


# --------------------------------- main --------------------------------------

if __name__ == "__main__":
    key = jax.random.PRNGKey(0)
    k_in, k_p = jax.random.split(key)

    N, INC, H, W, OUTC = 2, 3, 16, 16, 4
    left_eye = jax.random.normal(jax.random.fold_in(k_in, 0),
                                 (N, INC, H, W), _F32)
    right_eye = jax.random.normal(jax.random.fold_in(k_in, 1),
                                  (N, INC, H, W), _F32)

    params = init_resnet14(k_p, INC, OUTC)
    packed = pack_params(params, N, H, W)
    roll_sign = _detect_roll_sign()
    fwd = make_forward(packed, roll_sign)

    out = fwd(left_eye, right_eye)
    jax.block_until_ready(out)
    assert out.shape == (N, OUTC) and out.dtype == _F32

    # Numerical check against a pure-JAX f32 (HIGHEST precision) reference;
    # the kernel's bf16 activation path stays within a couple of percent.
    ref = _ref_forward(left_eye, right_eye, params)
    err = float(jnp.max(jnp.abs(out - ref)) / (jnp.max(jnp.abs(ref)) + 1e-6))
    assert err < 0.15, f"kernel/reference mismatch: rel-max err {err:.4f}"
    print("KERNEL_OK")
</pallas_src>

<mosaic_0001>
module attributes {stable_mosaic.version = 11 : i64} {
  func.func @_roll_probe_kernel(%arg0: memref<8x128xf32, #tpu.memory_space<vmem>>, %arg1: memref<8x128xf32, #tpu.memory_space<vmem>>) attributes {dimension_semantics = [], scalar_prefetch = 0 : i64, scratch_operands = 0 : i64, tpu.core_type = #tpu.core_type<tc>} {
    %c0 = arith.constant 0 : index
    %c0_0 = arith.constant 0 : index
    %0 = vector.load %arg0[%c0, %c0_0] : memref<8x128xf32, #tpu.memory_space<vmem>>, vector<8x128xf32>
    %c1_i32 = arith.constant 1 : i32
    %1 = tpu.dynamic_rotate %0 by %c1_i32 dim 1 : vector<8x128xf32>, i32 -> vector<8x128xf32>
    %c0_1 = arith.constant 0 : index
    %c0_2 = arith.constant 0 : index
    %2 = vector.load %arg1[%c0_1, %c0_2] : memref<8x128xf32, #tpu.memory_space<vmem>>, vector<8x128xf32>
    tpu.vector_store %arg1[%c0_1, %c0_2], %1 {strides = array<i32>} : memref<8x128xf32, #tpu.memory_space<vmem>>, vector<8x128xf32>,
    return
  }
}

</mosaic_0001>

<llo_original>
// kernel: tpu_custom_call.1
$region0: #{tpu_custom_call.1}
  #allocation0 [shape = 'u32[]', space=smem, size = 0x4, offset = 0x4, fixed_abs, tag = 'smem constant byte address 0x4 - core index']
  #allocation1 [shape = 'u32[144,128]{1,0:T(1,128)}', space=vmem, size = 0x12000, scoped, tag = 'internal scratch']
  %s0 = inlined_call_operand.hbm [shape: f32[8,128], index: 0, kind: input, shape index: {}]
  %s1 = inlined_call_operand.hbm [shape: f32[8,128], index: 1, kind: output, shape index: {}]
  %s2 = sld [smem:[#allocation0]]
  $region18: #{tpu_custom_call.1} parent=0
    _
  %s4 = ssub.s32 1, %s2
  %s5 = scalar_select 0, %s4, %s2
  $region1: #{tpu_custom_call.1} parent=0
    #allocation2 [shape = 'u8[4096]{0}', space=vmem, size = 0x1000, scoped, tag = 'input window, operand 0, single buffered']
    #allocation3 [shape = 's32[1]{0}', space=sflag, size = 0x4, scoped, tag = 'scoped memory for tpu_custom_call.1']
    #allocation4 [shape = 's32[1]{0}', space=sflag, size = 0x4, scoped, tag = 'scoped memory for tpu_custom_call.1']
    #allocation5 [shape = 'u8[4096]{0}', space=vmem, size = 0x1000, scoped, tag = 'output window, operand 0, single buffered']
    %6 = vsyncpa [#allocation3], 0
    %7 = vsyncpa [#allocation4], 0
    // Predicated region
    $region2: #{tpu_custom_call.1} parent=1 // pred_check
      _
    $region3: #{tpu_custom_call.1} parent=1 // pred_check_branch
      %9 = sbr.rel (0) target = $region5
    $region4: #{tpu_custom_call.1} parent=1 // pred_region
      %s11 = ssub.s32 128, 128
      %12 = vsyncadd [#allocation3], %s11
      %s14 = sshll.u32 [#allocation2], 4
      %s15 = int_to_ptr.vmem [resolvable:$true] %s14
      %17 = dma.hbm_to_vmem [thread:$0]  %s0, 128, %s15, [#allocation3]
    $region5: #{tpu_custom_call.1} parent=1 // pred_fallthru
      _
    // Predicated region
    $region6: #{tpu_custom_call.1} parent=1 // pred_check
      _
    $region7: #{tpu_custom_call.1} parent=1 // pred_check_branch
      %19 = sbr.rel (0) target = $region9
    $region8: #{tpu_custom_call.1} parent=1 // pred_region
      %20 = dma.done [#allocation3], 128
    $region9: #{tpu_custom_call.1} parent=1 // pred_fallthru
      _
    %v21 = vld [vmem:[#allocation2] sm:$0xff]
    %22 = vrot.lane.b32.xlu0 %v21, 1
    %v23 = vpop.permute.xlu0 %22
    %24 = vst [vmem:[#allocation5] sm:$0xff] %v23
    // Predicated region
    $region10: #{tpu_custom_call.1} parent=1 // pred_check
      _
    $region11: #{tpu_custom_call.1} parent=1 // pred_check_branch
      %26 = sbr.rel (0) target = $region13
    $region12: #{tpu_custom_call.1} parent=1 // pred_region
      %s28 = ssub.s32 128, 128
      %29 = vsyncadd [#allocation4], %s28
      %s31 = sshll.u32 [#allocation5], 4
      %s32 = int_to_ptr.vmem [resolvable:$true] %s31
      %34 = dma.vmem_to_hbm [thread:$0]  %s32, 128, %s1, [#allocation4]
    $region13: #{tpu_custom_call.1} parent=1 // pred_fallthru
      _
    // Predicated region
    $region14: #{tpu_custom_call.1} parent=1 // pred_check
      _
    $region15: #{tpu_custom_call.1} parent=1 // pred_check_branch
      %36 = sbr.rel (0) target = $region17
    $region16: #{tpu_custom_call.1} parent=1 // pred_region
      %37 = dma.done [#allocation4], 128
    $region17: #{tpu_custom_call.1} parent=1 // pred_fallthru
      _
    %38 = vsyncpa [#allocation3], 1
    %39 = vsyncpa [#allocation4], 1

</llo_original>
